<compile_context>
chip_gen: v7x
topology: tpu7x:2x2x1
jax: 0.10.0
libtpu: 0.0.40
codegen_flags: <defaults>
</compile_context>

<pallas_src>
import math

import jax
import jax.numpy as jnp
from jax import lax
from jax.experimental import pallas as pl
from jax.experimental.pallas import tpu as pltpu

# Lanes per inner-loop chunk.  h1 = (32, 512) f32 = 16 vregs, h2 = 8 vregs:
# comfortably inside the 64-vreg file, no VMEM scratch for intermediates.
_CHUNK = 512


def _round_up(n, m):
    return ((n + m - 1) // m) * m


def healthnet_kernel(x_ref, w1_ref, b1_ref, w2_ref, b2_ref, w3_ref, b3_ref, o_ref):
    tb = x_ref.shape[1]          # static (block shape)
    n_chunks = tb // _CHUNK      # tb is always a multiple of _CHUNK

    # Hoisted out of the chunk loop: weights stay in vregs for the whole tile,
    # and the bias broadcasts happen once per tile (not once per chunk).
    w1 = w1_ref[...]
    w2 = w2_ref[...]
    w3 = w3_ref[...]
    b1 = jnp.broadcast_to(b1_ref[...], (w1.shape[0], _CHUNK))
    b2 = jnp.broadcast_to(b2_ref[...], (w2.shape[0], _CHUNK))
    b3 = jnp.broadcast_to(b3_ref[...], (w3.shape[0], _CHUNK))

    def body(c, carry):
        start = pl.multiple_of(c * _CHUNK, _CHUNK)
        x = x_ref[:, pl.ds(start, _CHUNK)]                     # (4, C)

        h1 = jnp.dot(w1, x, preferred_element_type=jnp.float32) + b1
        h1 = jnp.maximum(h1, 0.0)                              # (32, C)

        h2 = jnp.dot(w2, h1, preferred_element_type=jnp.float32) + b2
        h2 = jnp.maximum(h2, 0.0)                              # (16, C)

        out = jnp.dot(w3, h2, preferred_element_type=jnp.float32) + b3
        o_ref[:, pl.ds(start, _CHUNK)] = out.astype(o_ref.dtype)
        return carry

    lax.fori_loop(0, n_chunks, body, 0)


def _choose_tiling(batch, tb_target):
    """Pick (tile, padded_batch, n_steps): tile is a multiple of _CHUNK,
    padded_batch = tile * n_steps, and tiles are rebalanced so tail padding
    stays under one chunk-group rather than up to a full max-size tile."""
    padded = _round_up(max(batch, 1), _CHUNK)
    n_steps = max(1, math.ceil(padded / max(tb_target, _CHUNK)))
    # v7x megacore: prefer >= 2 grid steps so both TensorCores get work.
    if n_steps == 1 and padded >= 2 * _CHUNK:
        n_steps = 2
    tb = _round_up(math.ceil(padded / n_steps), _CHUNK)
    padded = tb * n_steps
    return tb, padded, n_steps


def healthnet_forward_fm(x_fm, params, *, block_b=262144):
    """Feature-major forward: x_fm is [4, B] float32 -> [2, B] float32.

    block_b is the target batch-tile (lanes) per grid step; 262144 gives ~6 MiB
    of HBM I/O per step (>=85% of roofline on v6e/v7x). On v5e ~131072 is
    already enough to amortize per-step overhead.
    """
    w1, b1, w2, b2, w3, b3 = params
    f_in, batch = x_fm.shape
    f_out = w3.shape[0]

    tb, padded_b, n_steps = _choose_tiling(batch, block_b)
    if padded_b != batch:
        x_fm = jnp.pad(x_fm, ((0, 0), (0, padded_b - batch)))

    # Weights/biases: constant index_map -> DMA'd once, VMEM-resident.
    resident = lambda shape: pl.BlockSpec(shape, lambda i: (0,) * len(shape))

    out_fm = pl.pallas_call(
        healthnet_kernel,
        out_shape=jax.ShapeDtypeStruct((f_out, padded_b), jnp.float32),
        grid=(n_steps,),
        in_specs=[
            pl.BlockSpec((f_in, tb), lambda i: (0, i)),   # x tile marches over batch
            resident(w1.shape), resident(b1.shape),
            resident(w2.shape), resident(b2.shape),
            resident(w3.shape), resident(b3.shape),
        ],
        out_specs=pl.BlockSpec((f_out, tb), lambda i: (0, i)),
        compiler_params=pltpu.CompilerParams(
            dimension_semantics=("parallel",),
            vmem_limit_bytes=40 * 1024 * 1024,
        ),
    )(x_fm, w1, b1, w2, b2, w3, b3)
    return out_fm[:, :batch]


def healthnet_forward(x, params, *, block_b=262144):
    """PyTorch-layout forward: x [B, 4] float32 -> [B, 2] float32.

    The boundary transposes are wrapper-side layout plumbing and cost more HBM
    traffic than the kernel itself; hot paths should keep activations
    feature-major and call healthnet_forward_fm directly.
    """
    out_fm = healthnet_forward_fm(jnp.transpose(x), params, block_b=block_b)
    return jnp.transpose(out_fm)


def init_params(key):
    """Deterministic init mimicking nn.Linear's U(-1/sqrt(fan_in), 1/sqrt(fan_in)).

    Weights stored in PyTorch (out_features, in_features) order; biases as
    (out_features, 1) so they broadcast along the batch/lane axis in-kernel.
    """
    dims = [(4, 32), (32, 16), (16, 2)]
    params = []
    for i, (fan_in, fan_out) in enumerate(dims):
        kw, kb = jax.random.split(jax.random.fold_in(key, i))
        bound = 1.0 / jnp.sqrt(jnp.float32(fan_in))
        w = jax.random.uniform(kw, (fan_out, fan_in), jnp.float32, -bound, bound)
        b = jax.random.uniform(kb, (fan_out, 1), jnp.float32, -bound, bound)
        params += [w, b]
    return tuple(params)


def healthnet_ref(x, params):
    w1, b1, w2, b2, w3, b3 = params
    h1 = jnp.maximum(x @ w1.T + b1.T, 0.0)
    h2 = jnp.maximum(h1 @ w2.T + b2.T, 0.0)
    return h2 @ w3.T + b3.T


if __name__ == "__main__":
    key = jax.random.PRNGKey(0)
    k_x, k_p, k_x2 = jax.random.split(key, 3)
    params = init_params(k_p)

    # Small shape implied by the module: batch=2, in_features=4.
    B = 2
    x = jax.random.normal(k_x, (B, 4), jnp.float32)
    out = jax.block_until_ready(healthnet_forward(x, params))
    ref = healthnet_ref(x, params)
    assert out.shape == (B, 2), out.shape
    assert jnp.allclose(out, ref, atol=1e-5, rtol=1e-5), "mismatch vs. reference"

    # Second check exercising padding, tile rebalancing, the 2-step grid and
    # the multi-chunk inner loop (still a small problem size).
    B2 = 1536
    x2 = jax.random.normal(k_x2, (B2, 4), jnp.float32)
    out2 = jax.block_until_ready(healthnet_forward(x2, params))
    ref2 = healthnet_ref(x2, params)
    assert out2.shape == (B2, 2), out2.shape
    assert jnp.allclose(out2, ref2, atol=1e-5, rtol=1e-5), "mismatch vs. reference (B=1536)"

    print("KERNEL_OK")
</pallas_src>

<mosaic_0001>
module attributes {stable_mosaic.version = 11 : i64} {
  func.func @healthnet_kernel(%arg0: i32, %arg1: memref<4x512xf32, #tpu.memory_space<vmem>>, %arg2: memref<32x4xf32, #tpu.memory_space<vmem>>, %arg3: memref<32x1xf32, #tpu.memory_space<vmem>>, %arg4: memref<16x32xf32, #tpu.memory_space<vmem>>, %arg5: memref<16x1xf32, #tpu.memory_space<vmem>>, %arg6: memref<2x16xf32, #tpu.memory_space<vmem>>, %arg7: memref<2x1xf32, #tpu.memory_space<vmem>>, %arg8: memref<2x512xf32, #tpu.memory_space<vmem>>) attributes {dimension_semantics = [#tpu.dimension_semantics<parallel>], iteration_bounds = array<i64: 1>, scalar_prefetch = 0 : i64, scratch_operands = 0 : i64, tpu.core_type = #tpu.core_type<tc>, window_params = [{transform_indices = @transform_0, window_bounds = array<i64: 4, 512>}, {pipeline_mode = #tpu.pipeline_mode<synchronous>, transform_indices = @transform_1, window_bounds = array<i64: 32, 4>}, {pipeline_mode = #tpu.pipeline_mode<synchronous>, transform_indices = @transform_2, window_bounds = array<i64: 32, 1>}, {pipeline_mode = #tpu.pipeline_mode<synchronous>, transform_indices = @transform_3, window_bounds = array<i64: 16, 32>}, {pipeline_mode = #tpu.pipeline_mode<synchronous>, transform_indices = @transform_4, window_bounds = array<i64: 16, 1>}, {pipeline_mode = #tpu.pipeline_mode<synchronous>, transform_indices = @transform_5, window_bounds = array<i64: 2, 16>}, {pipeline_mode = #tpu.pipeline_mode<synchronous>, transform_indices = @transform_6, window_bounds = array<i64: 2, 1>}, {transform_indices = @transform_7, window_bounds = array<i64: 2, 512>}]} {
    %c0 = arith.constant 0 : index
    %c0_0 = arith.constant 0 : index
    %0 = vector.load %arg2[%c0, %c0_0] : memref<32x4xf32, #tpu.memory_space<vmem>>, vector<32x4xf32>
    %c0_1 = arith.constant 0 : index
    %c0_2 = arith.constant 0 : index
    %1 = vector.load %arg4[%c0_1, %c0_2] : memref<16x32xf32, #tpu.memory_space<vmem>>, vector<16x32xf32>
    %c0_3 = arith.constant 0 : index
    %c0_4 = arith.constant 0 : index
    %2 = vector.load %arg6[%c0_3, %c0_4] : memref<2x16xf32, #tpu.memory_space<vmem>>, vector<2x16xf32>
    %c0_5 = arith.constant 0 : index
    %c0_6 = arith.constant 0 : index
    %3 = vector.load %arg3[%c0_5, %c0_6] : memref<32x1xf32, #tpu.memory_space<vmem>>, vector<32x1xf32>
    %4 = vector.shape_cast %3 : vector<32x1xf32> to vector<32x1xf32>
    %5 = vector.broadcast %4 : vector<32x1xf32> to vector<32x512xf32>
    %c0_7 = arith.constant 0 : index
    %c0_8 = arith.constant 0 : index
    %6 = vector.load %arg5[%c0_7, %c0_8] : memref<16x1xf32, #tpu.memory_space<vmem>>, vector<16x1xf32>
    %7 = vector.shape_cast %6 : vector<16x1xf32> to vector<16x1xf32>
    %8 = vector.broadcast %7 : vector<16x1xf32> to vector<16x512xf32>
    %c0_9 = arith.constant 0 : index
    %c0_10 = arith.constant 0 : index
    %9 = vector.load %arg7[%c0_9, %c0_10] : memref<2x1xf32, #tpu.memory_space<vmem>>, vector<2x1xf32>
    %10 = vector.shape_cast %9 : vector<2x1xf32> to vector<2x1xf32>
    %11 = vector.broadcast %10 : vector<2x1xf32> to vector<2x512xf32>
    %c0_i32 = arith.constant 0 : i32
    %c512_i32 = arith.constant 512 : i32
    %12 = arith.muli %c0_i32, %c512_i32 : i32
    %13 = tpu.assume_multiple %12, 512 : i32
    %c0_11 = arith.constant 0 : index
    %14 = arith.index_cast %13 : i32 to index
    %15 = vector.load %arg1[%c0_11, %14] : memref<4x512xf32, #tpu.memory_space<vmem>>, vector<4x512xf32>
    %cst = arith.constant dense<0.000000e+00> : vector<32x512xf32>
    %16 = tpu.matmul %0, %15, %cst {dimension_numbers = #tpu.dot_dimension_numbers<[1], [0], [0], [1], [0, 0, 1, 1], [], []>} : vector<32x4xf32>, vector<4x512xf32>, vector<32x512xf32> -> vector<32x512xf32>
    %17 = arith.addf %16, %5 : vector<32x512xf32>
    %cst_12 = arith.constant 0.000000e+00 : f32
    %18 = vector.broadcast %cst_12 : f32 to vector<32x512xf32>
    %19 = arith.maximumf %17, %18 : vector<32x512xf32>
    %cst_13 = arith.constant dense<0.000000e+00> : vector<16x512xf32>
    %20 = tpu.matmul %1, %19, %cst_13 {dimension_numbers = #tpu.dot_dimension_numbers<[1], [0], [0], [1], [0, 0, 1, 1], [], []>} : vector<16x32xf32>, vector<32x512xf32>, vector<16x512xf32> -> vector<16x512xf32>
    %21 = arith.addf %20, %8 : vector<16x512xf32>
    %cst_14 = arith.constant 0.000000e+00 : f32
    %22 = vector.broadcast %cst_14 : f32 to vector<16x512xf32>
    %23 = arith.maximumf %21, %22 : vector<16x512xf32>
    %cst_15 = arith.constant dense<0.000000e+00> : vector<2x512xf32>
    %24 = tpu.matmul %2, %23, %cst_15 {dimension_numbers = #tpu.dot_dimension_numbers<[1], [0], [0], [1], [0, 0, 1, 1], [], []>} : vector<2x16xf32>, vector<16x512xf32>, vector<2x512xf32> -> vector<2x512xf32>
    %25 = arith.addf %24, %11 : vector<2x512xf32>
    %c0_16 = arith.constant 0 : index
    %26 = arith.index_cast %13 : i32 to index
    %27 = vector.load %arg8[%c0_16, %26] : memref<2x512xf32, #tpu.memory_space<vmem>>, vector<2x512xf32>
    tpu.vector_store %arg8[%c0_16, %26], %25 {strides = array<i32>} : memref<2x512xf32, #tpu.memory_space<vmem>>, vector<2x512xf32>,
    %c1_i32 = arith.constant 1 : i32
    return
  }
  func.func @transform_0(%arg0: i32) -> (i32, i32) {
    %c0_i32 = arith.constant 0 : i32
    %c0_i32_0 = arith.constant 0 : i32
    return %c0_i32, %arg0 : i32, i32
  }
  func.func @transform_1(%arg0: i32) -> (i32, i32) {
    %c0_i32 = arith.constant 0 : i32
    %c0_i32_0 = arith.constant 0 : i32
    %c0_i32_1 = arith.constant 0 : i32
    return %c0_i32, %c0_i32_0 : i32, i32
  }
  func.func @transform_2(%arg0: i32) -> (i32, i32) {
    %c0_i32 = arith.constant 0 : i32
    %c0_i32_0 = arith.constant 0 : i32
    %c0_i32_1 = arith.constant 0 : i32
    return %c0_i32, %c0_i32_0 : i32, i32
  }
  func.func @transform_3(%arg0: i32) -> (i32, i32) {
    %c0_i32 = arith.constant 0 : i32
    %c0_i32_0 = arith.constant 0 : i32
    %c0_i32_1 = arith.constant 0 : i32
    return %c0_i32, %c0_i32_0 : i32, i32
  }
  func.func @transform_4(%arg0: i32) -> (i32, i32) {
    %c0_i32 = arith.constant 0 : i32
    %c0_i32_0 = arith.constant 0 : i32
    %c0_i32_1 = arith.constant 0 : i32
    return %c0_i32, %c0_i32_0 : i32, i32
  }
  func.func @transform_5(%arg0: i32) -> (i32, i32) {
    %c0_i32 = arith.constant 0 : i32
    %c0_i32_0 = arith.constant 0 : i32
    %c0_i32_1 = arith.constant 0 : i32
    return %c0_i32, %c0_i32_0 : i32, i32
  }
  func.func @transform_6(%arg0: i32) -> (i32, i32) {
    %c0_i32 = arith.constant 0 : i32
    %c0_i32_0 = arith.constant 0 : i32
    %c0_i32_1 = arith.constant 0 : i32
    return %c0_i32, %c0_i32_0 : i32, i32
  }
  func.func @transform_7(%arg0: i32) -> (i32, i32) {
    %c0_i32 = arith.constant 0 : i32
    %c0_i32_0 = arith.constant 0 : i32
    return %c0_i32, %arg0 : i32, i32
  }
}

</mosaic_0001>

<llo_original>
// kernel: tpu_custom_call.1
$region0: #{tpu_custom_call.1}
  #allocation0 [shape = 'u32[]', space=smem, size = 0x4, offset = 0x4, fixed_abs, tag = 'smem constant byte address 0x4 - core index']
  #allocation1 [shape = 'u32[144,128]{1,0:T(1,128)}', space=vmem, size = 0x12000, scoped, tag = 'internal scratch']
  %s0 = inlined_call_operand.vmem [shape: f32[4,512], index: 0, kind: input, shape index: {}]
  %s1 = inlined_call_operand.vmem [shape: f32[32,4], index: 1, kind: input, shape index: {}]
  %s2 = inlined_call_operand.vmem [shape: f32[32,1], index: 2, kind: input, shape index: {}]
  %s3 = inlined_call_operand.vmem [shape: f32[16,32], index: 3, kind: input, shape index: {}]
  %s4 = inlined_call_operand.vmem [shape: f32[16,1], index: 4, kind: input, shape index: {}]
  %s5 = inlined_call_operand.vmem [shape: f32[2,16], index: 5, kind: input, shape index: {}]
  %s6 = inlined_call_operand.vmem [shape: f32[2,1], index: 6, kind: input, shape index: {}]
  %s7 = inlined_call_operand.hbm [shape: f32[2,512], index: 7, kind: output, shape index: {}]
  %s8 = sld [smem:[#allocation0]]
  $region38: #{tpu_custom_call.1} parent=0
    _
  %s10 = ssub.s32 1, %s8
  %s11 = scalar_select 0, %s10, %s8
  $region1: #{tpu_custom_call.1} parent=0
    #allocation2 [shape = 'u8[4096]{0}', space=vmem, size = 0x1000, scoped, tag = 'output window, operand 0, single buffered']
    #allocation3 [shape = 's32[1]{0}', space=sflag, size = 0x4, scoped, tag = 'scoped memory for tpu_custom_call.1']
    %12 = vsyncpa [#allocation3], 0
    // Predicated region
    $region2: #{tpu_custom_call.1} parent=1 // pred_check
      _
    $region3: #{tpu_custom_call.1} parent=1 // pred_check_branch
      %14 = sbr.rel (0) target = $region5
    $region4: #{tpu_custom_call.1} parent=1 // pred_region
      _
    $region5: #{tpu_custom_call.1} parent=1 // pred_fallthru
      _
    // Predicated region
    $region6: #{tpu_custom_call.1} parent=1 // pred_check
      _
    $region7: #{tpu_custom_call.1} parent=1 // pred_check_branch
      %16 = sbr.rel (0) target = $region9
    $region8: #{tpu_custom_call.1} parent=1 // pred_region
      _
    $region9: #{tpu_custom_call.1} parent=1 // pred_fallthru
      _
    // Predicated region
    $region10: #{tpu_custom_call.1} parent=1 // pred_check
      _
    $region11: #{tpu_custom_call.1} parent=1 // pred_check_branch
      %18 = sbr.rel (0) target = $region13
    $region12: #{tpu_custom_call.1} parent=1 // pred_region
      _
    $region13: #{tpu_custom_call.1} parent=1 // pred_fallthru
      _
    // Predicated region
    $region14: #{tpu_custom_call.1} parent=1 // pred_check
      _
    $region15: #{tpu_custom_call.1} parent=1 // pred_check_branch
      %20 = sbr.rel (0) target = $region17
    $region16: #{tpu_custom_call.1} parent=1 // pred_region
      _
    $region17: #{tpu_custom_call.1} parent=1 // pred_fallthru
      _
    // Predicated region
    $region18: #{tpu_custom_call.1} parent=1 // pred_check
      _
    $region19: #{tpu_custom_call.1} parent=1 // pred_check_branch
      %22 = sbr.rel (0) target = $region21
    $region20: #{tpu_custom_call.1} parent=1 // pred_region
      _
    $region21: #{tpu_custom_call.1} parent=1 // pred_fallthru
      _
    // Predicated region
    $region22: #{tpu_custom_call.1} parent=1 // pred_check
      _
    $region23: #{tpu_custom_call.1} parent=1 // pred_check_branch
      %24 = sbr.rel (0) target = $region25
    $region24: #{tpu_custom_call.1} parent=1 // pred_region
      _
    $region25: #{tpu_custom_call.1} parent=1 // pred_fallthru
      _
    // Predicated region
    $region26: #{tpu_custom_call.1} parent=1 // pred_check
      _
    $region27: #{tpu_custom_call.1} parent=1 // pred_check_branch
      %26 = sbr.rel (0) target = $region29
    $region28: #{tpu_custom_call.1} parent=1 // pred_region
      _
    $region29: #{tpu_custom_call.1} parent=1 // pred_fallthru
      _
    %v27 = vld [vmem:[%s1] sm:$0xff]
    %v28 = vld [vmem:[%s1 + $0x8] sm:$0xff]
    %v29 = vld [vmem:[%s1 + $0x10] sm:$0xff]
    %v30 = vld [vmem:[%s1 + $0x18] sm:$0xff]
    %v31 = vld [vmem:[%s3] sm:$0xff]
    %v32 = vld [vmem:[%s3 + $0x8] sm:$0xff]
    %v33 = vld [vmem:[%s5] sm:$0x3]
    %v34 = vld [vmem:[%s2] sm:$0xff]
    %v35 = vld [vmem:[%s2 + $0x8] sm:$0xff]
    %v36 = vld [vmem:[%s2 + $0x10] sm:$0xff]
    %v37 = vld [vmem:[%s2 + $0x18] sm:$0xff]
    %39 = vset.pattern.permute.xlu0 0
    %40 = vperm.xlu0 %39, %v34
    %v41 = vpop.permute.xlu0 %40
    %44 = vset.pattern.permute.xlu0 0
    %45 = vperm.xlu0 %44, %v35
    %v46 = vpop.permute.xlu0 %45
    %49 = vset.pattern.permute.xlu0 0
    %50 = vperm.xlu0 %49, %v36
    %v51 = vpop.permute.xlu0 %50
    %54 = vset.pattern.permute.xlu0 0
    %55 = vperm.xlu0 %54, %v37
    %v56 = vpop.permute.xlu0 %55
    %v58 = vld [vmem:[%s4] sm:$0xff]
    %v59 = vld [vmem:[%s4 + $0x8] sm:$0xff]
    %61 = vset.pattern.permute.xlu0 0
    %62 = vperm.xlu0 %61, %v58
    %v63 = vpop.permute.xlu0 %62
    %66 = vset.pattern.permute.xlu0 0
    %67 = vperm.xlu0 %66, %v59
    %v68 = vpop.permute.xlu0 %67
    %v70 = vld [vmem:[%s6] sm:$0x3]
    %72 = vset.pattern.permute.xlu0 0
    %73 = vperm.xlu0 %72, %v70
    %v74 = vpop.permute.xlu0 %73
    %v76 = vld [vmem:[%s0] sm:$0xff]
    %v77 = vld [vmem:[%s0 + $0x8] sm:$0xff]
    %v80 = vcombine.high %v76, %v76
    %v81 = vcombine.high %v77, %v77
    %vm82 = vcmask 31744
    %v84 = vsel %vm82, %v27, 0
    %v87 = vsel %vm82, %v28, 0
    %v90 = vsel %vm82, %v29, 0
    %v93 = vsel %vm82, %v30, 0
    %vm95 = vcmask 1043456
    %v96 = vsel %vm95, %v76, 0
    %v98 = vsel %vm95, %v80, 0
    %v100 = vsel %vm95, %v77, 0
    %v102 = vsel %vm95, %v81, 0
    %104 = vmatprep.subr.mxu0 %v98
    %105 = vmatpush1.msra.mxu0 %v96
    %106 = vmatprep.subr.mxu0 0.0
    %107 = vmatpush1.msra.mxu0 0.0
    %108 = vmatprep.subr.mxu0 0.0
    %109 = vmatpush1.msra.mxu0 0.0
    %110 = vmatprep.subr.mxu0 0.0
    %111 = vmatpush1.msra.mxu0 0.0
    %112 = vmatprep.subr.mxu0 0.0
    %113 = vmatpush1.msra.mxu0 0.0
    %114 = vmatprep.subr.mxu0 0.0
    %115 = vmatpush1.msra.mxu0 0.0
    %116 = vmatprep.subr.mxu0 0.0
    %117 = vmatpush1.msra.mxu0 0.0
    %118 = vmatprep.subr.mxu0 0.0
    %119 = vmatpush1.msra.mxu0 0.0
    %120 = vmatprep.subr.mxu0 0.0
    %121 = vmatpush1.msra.mxu0 0.0
    %122 = vmatprep.subr.mxu0 0.0
    %123 = vmatpush1.msra.mxu0 0.0
    %124 = vmatprep.subr.mxu0 0.0
    %125 = vmatpush1.msra.mxu0 0.0
    %126 = vmatprep.subr.mxu0 0.0
    %127 = vmatpush1.msra.mxu0 0.0
    %128 = vmatprep.subr.mxu0 0.0
    %129 = vmatpush1.msra.mxu0 0.0
    %130 = vmatprep.subr.mxu0 0.0
    %131 = vmatpush1.msra.mxu0 0.0
    %132 = vmatprep.subr.mxu0 0.0
    %133 = vmatpush1.msra.mxu0 0.0
    %134 = vmatprep.subr.mxu0 0.0
    %135 = vmatpush1.msra.mxu0 0.0
    %136 = vmatprep.subr.mxu0 0.0
    %137 = vmatpush1.msra.mxu0 0.0
    %138 = vmatprep.subr.mxu0 0.0
    %139 = vmatpush1.msra.mxu0 0.0
    %140 = vmatprep.subr.mxu0 0.0
    %141 = vmatpush1.msra.mxu0 0.0
    %142 = vmatprep.subr.mxu0 0.0
    %143 = vmatpush1.msra.mxu0 0.0
    %144 = vmatprep.subr.mxu0 0.0
    %145 = vmatpush1.msra.mxu0 0.0
    %146 = vmatprep.subr.mxu0 0.0
    %147 = vmatpush1.msra.mxu0 0.0
    %148 = vmatprep.subr.mxu0 0.0
    %149 = vmatpush1.msra.mxu0 0.0
    %150 = vmatprep.subr.mxu0 0.0
    %151 = vmatpush1.msra.mxu0 0.0
    %152 = vmatprep.subr.mxu0 0.0
    %153 = vmatpush1.msra.mxu0 0.0
    %154 = vmatprep.subr.mxu0 0.0
    %155 = vmatpush1.msra.mxu0 0.0
    %156 = vmatprep.subr.mxu0 0.0
    %157 = vmatpush1.msra.mxu0 0.0
    %158 = vmatprep.subr.mxu0 0.0
    %159 = vmatpush1.msra.mxu0 0.0
    %160 = vmatprep.subr.mxu0 0.0
    %161 = vmatpush1.msra.mxu0 0.0
    %162 = vmatprep.subr.mxu0 0.0
    %163 = vmatpush1.msra.mxu0 0.0
    %164 = vmatprep.subr.mxu0 0.0
    %165 = vmatpush1.msra.mxu0 0.0
    %166 = vmatprep.subr.mxu0 0.0
    %167 = vmatpush1.msra.mxu0 0.0
    %168 = vmatprep.mubr.f32.mxu0 0.0
    %169 = vmatmul.mubr.f32.gmra.mrb[0].mxu0 %v84
    %v170 = vpop.f32.mrb[0].mxu0
    %v171 = vadd.f32 %v41, %v170
    %v172 = vpop.f32.mrb[0].mxu0
    %v173 = vadd.f32 %v41, %v172
    %174 = vmatprep.mubr.f32.mxu0 0.0
    %175 = vmatmul.mubr.f32.gmra.mrb[0].mxu0 %v87
    %v176 = vpop.f32.mrb[0].mxu0
    %v177 = vadd.f32 %v46, %v176
    %v178 = vpop.f32.mrb[0].mxu0
    %v179 = vadd.f32 %v46, %v178
    %180 = vmatprep.mubr.f32.mxu0 0.0
    %181 = vmatmul.mubr.f32.gmra.mrb[0].mxu0 %v90
    %v182 = vpop.f32.mrb[0].mxu0
    %v183 = vadd.f32 %v51, %v182
    %v184 = vpop.f32.mrb[0].mxu0
    %v185 = vadd.f32 %v51, %v184
    %186 = vmatprep.mubr.f32.mxu0 0.0
    %187 = vmatmul.mubr.f32.gmra.mrb[0].mxu0 %v93
    %v188 = vpop.f32.mrb[0].mxu0
    %v189 = vadd.f32 %v56, %v188
    %v190 = vpop.f32.mrb[0].mxu0
    %v191 = vadd.f32 %v56, %v190
    %192 = vdwg.mxu0
    %193 = vmatprep.subr.mxu0 %v102
    %194 = vmatpush1.msra.mxu0 %v100
    %195 = vmatprep.subr.mxu0 0.0
    %196 = vmatpush1.msra.mxu0 0.0
    %197 = vmatprep.subr.mxu0 0.0
    %198 = vmatpush1.msra.mxu0 0.0
    %199 = vmatprep.subr.mxu0 0.0
    %200 = vmatpush1.msra.mxu0 0.0
    %201 = vmatprep.subr.mxu0 0.0
    %202 = vmatpush1.msra.mxu0 0.0
    %203 = vmatprep.subr.mxu0 0.0
    %204 = vmatpush1.msra.mxu0 0.0
    %205 = vmatprep.subr.mxu0 0.0
    %206 = vmatpush1.msra.mxu0 0.0
    %207 = vmatprep.subr.mxu0 0.0
    %208 = vmatpush1.msra.mxu0 0.0
    %209 = vmatprep.subr.mxu0 0.0
    %210 = vmatpush1.msra.mxu0 0.0
    %211 = vmatprep.subr.mxu0 0.0
    %212 = vmatpush1.msra.mxu0 0.0
    %213 = vmatprep.subr.mxu0 0.0
    %214 = vmatpush1.msra.mxu0 0.0
    %215 = vmatprep.subr.mxu0 0.0
    %216 = vmatpush1.msra.mxu0 0.0
    %217 = vmatprep.subr.mxu0 0.0
    %218 = vmatpush1.msra.mxu0 0.0
    %219 = vmatprep.subr.mxu0 0.0
    %220 = vmatpush1.msra.mxu0 0.0
    %221 = vmatprep.subr.mxu0 0.0
    %222 = vmatpush1.msra.mxu0 0.0
    %223 = vmatprep.subr.mxu0 0.0
    %224 = vmatpush1.msra.mxu0 0.0
    %225 = vmatprep.subr.mxu0 0.0
    %226 = vmatpush1.msra.mxu0 0.0
    %227 = vmatprep.subr.mxu0 0.0
    %228 = vmatpush1.msra.mxu0 0.0
    %229 = vmatprep.subr.mxu0 0.0
    %230 = vmatpush1.msra.mxu0 0.0
    %231 = vmatprep.subr.mxu0 0.0
    %232 = vmatpush1.msra.mxu0 0.0
    %233 = vmatprep.subr.mxu0 0.0
    %234 = vmatpush1.msra.mxu0 0.0
    %235 = vmatprep.subr.mxu0 0.0
    %236 = vmatpush1.msra.mxu0 0.0
    %237 = vmatprep.subr.mxu0 0.0
    %238 = vmatpush1.msra.mxu0 0.0
    %239 = vmatprep.subr.mxu0 0.0
    %240 = vmatpush1.msra.mxu0 0.0
    %241 = vmatprep.subr.mxu0 0.0
    %242 = vmatpush1.msra.mxu0 0.0
    %243 = vmatprep.subr.mxu0 0.0
    %244 = vmatpush1.msra.mxu0 0.0
    %245 = vmatprep.subr.mxu0 0.0
    %246 = vmatpush1.msra.mxu0 0.0
    %247 = vmatprep.subr.mxu0 0.0
    %248 = vmatpush1.msra.mxu0 0.0
    %249 = vmatprep.subr.mxu0 0.0
    %250 = vmatpush1.msra.mxu0 0.0
    %251 = vmatprep.subr.mxu0 0.0
    %252 = vmatpush1.msra.mxu0 0.0
    %253 = vmatprep.subr.mxu0 0.0
    %254 = vmatpush1.msra.mxu0 0.0
    %255 = vmatprep.subr.mxu0 0.0
    %256 = vmatpush1.msra.mxu0 0.0
    %257 = vmatprep.mubr.f32.mxu0 0.0
    %258 = vmatmul.mubr.f32.gmra.mrb[0].mxu0 %v84
    %v259 = vpop.f32.mrb[0].mxu0
    %v260 = vadd.f32 %v41, %v259
    %v261 = vpop.f32.mrb[0].mxu0
    %v262 = vadd.f32 %v41, %v261
    %263 = vmatprep.mubr.f32.mxu0 0.0
    %264 = vmatmul.mubr.f32.gmra.mrb[0].mxu0 %v87
    %v265 = vpop.f32.mrb[0].mxu0
    %v266 = vadd.f32 %v46, %v265
    %v267 = vpop.f32.mrb[0].mxu0
    %v268 = vadd.f32 %v46, %v267
    %269 = vmatprep.mubr.f32.mxu0 0.0
    %270 = vmatmul.mubr.f32.gmra.mrb[0].mxu0 %v90
    %v271 = vpop.f32.mrb[0].mxu0
    %v272 = vadd.f32 %v51, %v271
    %v273 = vpop.f32.mrb[0].mxu0
    %v274 = vadd.f32 %v51, %v273
    %275 = vmatprep.mubr.f32.mxu0 0.0
    %276 = vmatmul.mubr.f32.gmra.mrb[0].mxu0 %v93
    %v277 = vpop.f32.mrb[0].mxu0
    %v278 = vadd.f32 %v56, %v277
    %v279 = vpop.f32.mrb[0].mxu0
    %v280 = vadd.f32 %v56, %v279
    %281 = vdwg.mxu0
    %v282 = vmax.f32 %v171, 0.0
    %v283 = vmax.f32 %v173, 0.0
    %v284 = vmax.f32 %v260, 0.0
    %v285 = vmax.f32 %v262, 0.0
    %v286 = vmax.f32 %v177, 0.0
    %v287 = vmax.f32 %v179, 0.0
    %v288 = vmax.f32 %v266, 0.0
    %v289 = vmax.f32 %v268, 0.0
    %v290 = vmax.f32 %v183, 0.0
    %v291 = vmax.f32 %v185, 0.0
    %v292 = vmax.f32 %v272, 0.0
    %v293 = vmax.f32 %v274, 0.0
    %v294 = vmax.f32 %v189, 0.0
    %v295 = vmax.f32 %v191, 0.0
    %v296 = vmax.f32 %v278, 0.0
    %v297 = vmax.f32 %v280, 0.0
    %vm298 = vcmask 261120
    %v300 = vsel %vm298, %v31, 0
    %v303 = vsel %vm298, %v32, 0
    %305 = vmatprep.subr.mxu0 %v283
    %306 = vmatpush1.msra.mxu0 %v282
    %307 = vmatprep.subr.mxu0 %v287
    %308 = vmatpush1.msra.mxu0 %v286
    %309 = vmatprep.subr.mxu0 %v291
    %310 = vmatpush1.msra.mxu0 %v290
    %311 = vmatprep.subr.mxu0 %v295
    %312 = vmatpush1.msra.mxu0 %v294
    %313 = vmatprep.subr.mxu0 0.0
    %314 = vmatpush1.msra.mxu0 0.0
    %315 = vmatprep.subr.mxu0 0.0
    %316 = vmatpush1.msra.mxu0 0.0
    %317 = vmatprep.subr.mxu0 0.0
    %318 = vmatpush1.msra.mxu0 0.0
    %319 = vmatprep.subr.mxu0 0.0
    %320 = vmatpush1.msra.mxu0 0.0
    %321 = vmatprep.subr.mxu0 0.0
    %322 = vmatpush1.msra.mxu0 0.0
    %323 = vmatprep.subr.mxu0 0.0
    %324 = vmatpush1.msra.mxu0 0.0
    %325 = vmatprep.subr.mxu0 0.0
    %326 = vmatpush1.msra.mxu0 0.0
    %327 = vmatprep.subr.mxu0 0.0
    %328 = vmatpush1.msra.mxu0 0.0
    %329 = vmatprep.subr.mxu0 0.0
    %330 = vmatpush1.msra.mxu0 0.0
    %331 = vmatprep.subr.mxu0 0.0
    %332 = vmatpush1.msra.mxu0 0.0
    %333 = vmatprep.subr.mxu0 0.0
    %334 = vmatpush1.msra.mxu0 0.0
    %335 = vmatprep.subr.mxu0 0.0
    %336 = vmatpush1.msra.mxu0 0.0
    %337 = vmatprep.subr.mxu0 0.0
    %338 = vmatpush1.msra.mxu0 0.0
    %339 = vmatprep.subr.mxu0 0.0
    %340 = vmatpush1.msra.mxu0 0.0
    %341 = vmatprep.subr.mxu0 0.0
    %342 = vmatpush1.msra.mxu0 0.0
    %343 = vmatprep.subr.mxu0 0.0
    %344 = vmatpush1.msra.mxu0 0.0
    %345 = vmatprep.subr.mxu0 0.0
    %346 = vmatpush1.msra.mxu0 0.0
    %347 = vmatprep.subr.mxu0 0.0
    %348 = vmatpush1.msra.mxu0 0.0
    %349 = vmatprep.subr.mxu0 0.0
    %350 = vmatpush1.msra.mxu0 0.0
    %351 = vmatprep.subr.mxu0 0.0
    %352 = vmatpush1.msra.mxu0 0.0
    %353 = vmatprep.subr.mxu0 0.0
    %354 = vmatpush1.msra.mxu0 0.0
    %355 = vmatprep.subr.mxu0 0.0
    %356 = vmatpush1.msra.mxu0 0.0
    %357 = vmatprep.subr.mxu0 0.0
    %358 = vmatpush1.msra.mxu0 0.0
    %359 = vmatprep.subr.mxu0 0.0
    %360 = vmatpush1.msra.mxu0 0.0
    %361 = vmatprep.subr.mxu0 0.0
    %362 = vmatpush1.msra.mxu0 0.0
    %363 = vmatprep.subr.mxu0 0.0
    %364 = vmatpush1.msra.mxu0 0.0
    %365 = vmatprep.subr.mxu0 0.0
    %366 = vmatpush1.msra.mxu0 0.0
    %367 = vmatprep.subr.mxu0 0.0
    %368 = vmatpush1.msra.mxu0 0.0
    %369 = vmatprep.mubr.f32.mxu0 0.0
    %370 = vmatmul.mubr.f32.gmra.mrb[0].mxu0 %v300
    %v371 = vpop.f32.mrb[0].mxu0
    %v372 = vadd.f32 %v63, %v371
    %v373 = vpop.f32.mrb[0].mxu0
    %v374 = vadd.f32 %v63, %v373
    %375 = vmatprep.mubr.f32.mxu0 0.0
    %376 = vmatmul.mubr.f32.gmra.mrb[0].mxu0 %v303
    %v377 = vpop.f32.mrb[0].mxu0
    %v378 = vadd.f32 %v68, %v377
    %v379 = vpop.f32.mrb[0].mxu0
    %v380 = vadd.f32 %v68, %v379
    %381 = vdwg.mxu0
    %382 = vmatprep.subr.mxu0 %v285
    %383 = vmatpush1.msra.mxu0 %v284
    %384 = vmatprep.subr.mxu0 %v289
    %385 = vmatpush1.msra.mxu0 %v288
    %386 = vmatprep.subr.mxu0 %v293
    %387 = vmatpush1.msra.mxu0 %v292
    %388 = vmatprep.subr.mxu0 %v297
    %389 = vmatpush1.msra.mxu0 %v296
    %390 = vmatprep.subr.mxu0 0.0
    %391 = vmatpush1.msra.mxu0 0.0
    %392 = vmatprep.subr.mxu0 0.0
    %393 = vmatpush1.msra.mxu0 0.0
    %394 = vmatprep.subr.mxu0 0.0
    %395 = vmatpush1.msra.mxu0 0.0
    %396 = vmatprep.subr.mxu0 0.0
    %397 = vmatpush1.msra.mxu0 0.0
    %398 = vmatprep.subr.mxu0 0.0
    %399 = vmatpush1.msra.mxu0 0.0
    %400 = vmatprep.subr.mxu0 0.0
    %401 = vmatpush1.msra.mxu0 0.0
    %402 = vmatprep.subr.mxu0 0.0
    %403 = vmatpush1.msra.mxu0 0.0
    %404 = vmatprep.subr.mxu0 0.0
    %405 = vmatpush1.msra.mxu0 0.0
    %406 = vmatprep.subr.mxu0 0.0
    %407 = vmatpush1.msra.mxu0 0.0
    %408 = vmatprep.subr.mxu0 0.0
    %409 = vmatpush1.msra.mxu0 0.0
    %410 = vmatprep.subr.mxu0 0.0
    %411 = vmatpush1.msra.mxu0 0.0
    %412 = vmatprep.subr.mxu0 0.0
    %413 = vmatpush1.msra.mxu0 0.0
    %414 = vmatprep.subr.mxu0 0.0
    %415 = vmatpush1.msra.mxu0 0.0
    %416 = vmatprep.subr.mxu0 0.0
    %417 = vmatpush1.msra.mxu0 0.0
    %418 = vmatprep.subr.mxu0 0.0
    %419 = vmatpush1.msra.mxu0 0.0
    %420 = vmatprep.subr.mxu0 0.0
    %421 = vmatpush1.msra.mxu0 0.0
    %422 = vmatprep.subr.mxu0 0.0
    %423 = vmatpush1.msra.mxu0 0.0
    %424 = vmatprep.subr.mxu0 0.0
    %425 = vmatpush1.msra.mxu0 0.0
    %426 = vmatprep.subr.mxu0 0.0
    %427 = vmatpush1.msra.mxu0 0.0
    %428 = vmatprep.subr.mxu0 0.0
    %429 = vmatpush1.msra.mxu0 0.0
    %430 = vmatprep.subr.mxu0 0.0
    %431 = vmatpush1.msra.mxu0 0.0
    %432 = vmatprep.subr.mxu0 0.0
    %433 = vmatpush1.msra.mxu0 0.0
    %434 = vmatprep.subr.mxu0 0.0
    %435 = vmatpush1.msra.mxu0 0.0
    %436 = vmatprep.subr.mxu0 0.0
    %437 = vmatpush1.msra.mxu0 0.0
    %438 = vmatprep.subr.mxu0 0.0
    %439 = vmatpush1.msra.mxu0 0.0
    %440 = vmatprep.subr.mxu0 0.0
    %441 = vmatpush1.msra.mxu0 0.0
    %442 = vmatprep.subr.mxu0 0.0
    %443 = vmatpush1.msra.mxu0 0.0
    %444 = vmatprep.subr.mxu0 0.0
    %445 = vmatpush1.msra.mxu0 0.0
    %446 = vmatprep.mubr.f32.mxu0 0.0
    %447 = vmatmul.mubr.f32.gmra.mrb[0].mxu0 %v300
    %v448 = vpop.f32.mrb[0].mxu0
    %v449 = vadd.f32 %v63, %v448
    %v450 = vpop.f32.mrb[0].mxu0
    %v451 = vadd.f32 %v63, %v450
    %452 = vmatprep.mubr.f32.mxu0 0.0
    %453 = vmatmul.mubr.f32.gmra.mrb[0].mxu0 %v303
    %v454 = vpop.f32.mrb[0].mxu0
    %v455 = vadd.f32 %v68, %v454
    %v456 = vpop.f32.mrb[0].mxu0
    %v457 = vadd.f32 %v68, %v456
    %458 = vdwg.mxu0
    %v459 = vmax.f32 %v372, 0.0
    %v460 = vmax.f32 %v374, 0.0
    %v461 = vmax.f32 %v449, 0.0
    %v462 = vmax.f32 %v451, 0.0
    %v463 = vmax.f32 %v378, 0.0
    %v464 = vmax.f32 %v380, 0.0
    %v465 = vmax.f32 %v455, 0.0
    %v466 = vmax.f32 %v457, 0.0
    %vm467 = vcmask 130048
    %v469 = vsel %vm467, %v33, 0
    %471 = vmatprep.subr.mxu0 %v460
    %472 = vmatpush1.msra.mxu0 %v459
    %473 = vmatprep.subr.mxu0 %v464
    %474 = vmatpush1.msra.mxu0 %v463
    %475 = vmatprep.subr.mxu0 0.0
    %476 = vmatpush1.msra.mxu0 0.0
    %477 = vmatprep.subr.mxu0 0.0
    %478 = vmatpush1.msra.mxu0 0.0
    %479 = vmatprep.subr.mxu0 0.0
    %480 = vmatpush1.msra.mxu0 0.0
    %481 = vmatprep.subr.mxu0 0.0
    %482 = vmatpush1.msra.mxu0 0.0
    %483 = vmatprep.subr.mxu0 0.0
    %484 = vmatpush1.msra.mxu0 0.0
    %485 = vmatprep.subr.mxu0 0.0
    %486 = vmatpush1.msra.mxu0 0.0
    %487 = vmatprep.subr.mxu0 0.0
    %488 = vmatpush1.msra.mxu0 0.0
    %489 = vmatprep.subr.mxu0 0.0
    %490 = vmatpush1.msra.mxu0 0.0
    %491 = vmatprep.subr.mxu0 0.0
    %492 = vmatpush1.msra.mxu0 0.0
    %493 = vmatprep.subr.mxu0 0.0
    %494 = vmatpush1.msra.mxu0 0.0
    %495 = vmatprep.subr.mxu0 0.0
    %496 = vmatpush1.msra.mxu0 0.0
    %497 = vmatprep.subr.mxu0 0.0
    %498 = vmatpush1.msra.mxu0 0.0
    %499 = vmatprep.subr.mxu0 0.0
    %500 = vmatpush1.msra.mxu0 0.0
    %501 = vmatprep.subr.mxu0 0.0
    %502 = vmatpush1.msra.mxu0 0.0
    %503 = vmatprep.subr.mxu0 0.0
    %504 = vmatpush1.msra.mxu0 0.0
    %505 = vmatprep.subr.mxu0 0.0
    %506 = vmatpush1.msra.mxu0 0.0
    %507 = vmatprep.subr.mxu0 0.0
    %508 = vmatpush1.msra.mxu0 0.0
    %509 = vmatprep.subr.mxu0 0.0
    %510 = vmatpush1.msra.mxu0 0.0
    %511 = vmatprep.subr.mxu0 0.0
    %512 = vmatpush1.msra.mxu0 0.0
    %513 = vmatprep.subr.mxu0 0.0
    %514 = vmatpush1.msra.mxu0 0.0
    %515 = vmatprep.subr.mxu0 0.0
    %516 = vmatpush1.msra.mxu0 0.0
    %517 = vmatprep.subr.mxu0 0.0
    %518 = vmatpush1.msra.mxu0 0.0
    %519 = vmatprep.subr.mxu0 0.0
    %520 = vmatpush1.msra.mxu0 0.0
    %521 = vmatprep.subr.mxu0 0.0
    %522 = vmatpush1.msra.mxu0 0.0
    %523 = vmatprep.subr.mxu0 0.0
    %524 = vmatpush1.msra.mxu0 0.0
    %525 = vmatprep.subr.mxu0 0.0
    %526 = vmatpush1.msra.mxu0 0.0
    %527 = vmatprep.subr.mxu0 0.0
    %528 = vmatpush1.msra.mxu0 0.0
    %529 = vmatprep.subr.mxu0 0.0
    %530 = vmatpush1.msra.mxu0 0.0
    %531 = vmatprep.subr.mxu0 0.0
    %532 = vmatpush1.msra.mxu0 0.0
    %533 = vmatprep.subr.mxu0 0.0
    %534 = vmatpush1.msra.mxu0 0.0
    %535 = vmatprep.mubr.f32.mxu0 0.0
    %536 = vmatmul.mubr.f32.gmra.mrb[0].mxu0 %v469
    %v537 = vpop.f32.mrb[0].mxu0
    %v538 = vadd.f32 %v74, %v537
    %v539 = vpop.f32.mrb[0].mxu0
    %v540 = vadd.f32 %v74, %v539
    %541 = vdwg.mxu0
    %542 = vmatprep.subr.mxu0 %v462
    %543 = vmatpush1.msra.mxu0 %v461
    %544 = vmatprep.subr.mxu0 %v466
    %545 = vmatpush1.msra.mxu0 %v465
    %546 = vmatprep.subr.mxu0 0.0
    %547 = vmatpush1.msra.mxu0 0.0
    %548 = vmatprep.subr.mxu0 0.0
    %549 = vmatpush1.msra.mxu0 0.0
    %550 = vmatprep.subr.mxu0 0.0
    %551 = vmatpush1.msra.mxu0 0.0
    %552 = vmatprep.subr.mxu0 0.0
    %553 = vmatpush1.msra.mxu0 0.0
    %554 = vmatprep.subr.mxu0 0.0
    %555 = vmatpush1.msra.mxu0 0.0
    %556 = vmatprep.subr.mxu0 0.0
    %557 = vmatpush1.msra.mxu0 0.0
    %558 = vmatprep.subr.mxu0 0.0
    %559 = vmatpush1.msra.mxu0 0.0
    %560 = vmatprep.subr.mxu0 0.0
    %561 = vmatpush1.msra.mxu0 0.0
    %562 = vmatprep.subr.mxu0 0.0
    %563 = vmatpush1.msra.mxu0 0.0
    %564 = vmatprep.subr.mxu0 0.0
    %565 = vmatpush1.msra.mxu0 0.0
    %566 = vmatprep.subr.mxu0 0.0
    %567 = vmatpush1.msra.mxu0 0.0
    %568 = vmatprep.subr.mxu0 0.0
    %569 = vmatpush1.msra.mxu0 0.0
    %570 = vmatprep.subr.mxu0 0.0
    %571 = vmatpush1.msra.mxu0 0.0
    %572 = vmatprep.subr.mxu0 0.0
    %573 = vmatpush1.msra.mxu0 0.0
    %574 = vmatprep.subr.mxu0 0.0
    %575 = vmatpush1.msra.mxu0 0.0
    %576 = vmatprep.subr.mxu0 0.0
    %577 = vmatpush1.msra.mxu0 0.0
    %578 = vmatprep.subr.mxu0 0.0
    %579 = vmatpush1.msra.mxu0 0.0
    %580 = vmatprep.subr.mxu0 0.0
    %581 = vmatpush1.msra.mxu0 0.0
    %582 = vmatprep.subr.mxu0 0.0
    %583 = vmatpush1.msra.mxu0 0.0
    %584 = vmatprep.subr.mxu0 0.0
    %585 = vmatpush1.msra.mxu0 0.0
    %586 = vmatprep.subr.mxu0 0.0
    %587 = vmatpush1.msra.mxu0 0.0
    %588 = vmatprep.subr.mxu0 0.0
    %589 = vmatpush1.msra.mxu0 0.0
    %590 = vmatprep.subr.mxu0 0.0
    %591 = vmatpush1.msra.mxu0 0.0
    %592 = vmatprep.subr.mxu0 0.0
    %593 = vmatpush1.msra.mxu0 0.0
    %594 = vmatprep.subr.mxu0 0.0
    %595 = vmatpush1.msra.mxu0 0.0
    %596 = vmatprep.subr.mxu0 0.0
    %597 = vmatpush1.msra.mxu0 0.0
    %598 = vmatprep.subr.mxu0 0.0
    %599 = vmatpush1.msra.mxu0 0.0
    %600 = vmatprep.subr.mxu0 0.0
    %601 = vmatpush1.msra.mxu0 0.0
    %602 = vmatprep.subr.mxu0 0.0
    %603 = vmatpush1.msra.mxu0 0.0
    %604 = vmatprep.subr.mxu0 0.0
    %605 = vmatpush1.msra.mxu0 0.0
    %606 = vmatprep.mubr.f32.mxu0 0.0
    %607 = vmatmul.mubr.f32.gmra.mrb[0].mxu0 %v469
    %v608 = vpop.f32.mrb[0].mxu0
    %v609 = vadd.f32 %v74, %v608
    %v610 = vpop.f32.mrb[0].mxu0
    %v611 = vadd.f32 %v74, %v610
    %612 = vdwg.mxu0
    %v617 = vcombine.low %v538, %v540
    %v618 = vcombine.low %v609, %v611
    %v620 = vunpack.c.l.s4 1983009808
    %v621 = vunpack.c.0.s8 %v620
    %v622 = vlaneseq
    %v623 = vshrl.u32 %v622, 7
    %v624 = vsub.s32 %v621, %v623
    %v625 = vrot.slane %v617, %v624
    %v627 = vunpack.c.l.s4 1983009808
    %v628 = vunpack.c.0.s8 %v627
    %v629 = vlaneseq
    %v630 = vshrl.u32 %v629, 7
    %v631 = vsub.s32 %v628, %v630
    %v632 = vrot.slane %v618, %v631
    %v633 = vcombine.low %v625, %v632
    %635 = vst [vmem:[#allocation2] sm:$0xff] %v633
    // Predicated region
    $region30: #{tpu_custom_call.1} parent=1 // pred_check
      _
    $region31: #{tpu_custom_call.1} parent=1 // pred_check_branch
      %637 = sbr.rel (0) target = $region33
    $region32: #{tpu_custom_call.1} parent=1 // pred_region
      %s639 = ssub.s32 128, 128
      %640 = vsyncadd [#allocation3], %s639
      %s642 = sshll.u32 [#allocation2], 4
      %s643 = int_to_ptr.vmem [resolvable:$true] %s642
      %645 = dma.vmem_to_hbm [thread:$0]  %s643, 128, %s7, [#allocation3]
    $region33: #{tpu_custom_call.1} parent=1 // pred_fallthru
      _
    // Predicated region
    $region34: #{tpu_custom_call.1} parent=1 // pred_check
      _
    $region35: #{tpu_custom_call.1} parent=1 // pred_check_branch
      %647 = sbr.rel (0) target = $region37
    $region36: #{tpu_custom_call.1} parent=1 // pred_region
      %648 = dma.done [#allocation3], 128
    $region37: #{tpu_custom_call.1} parent=1 // pred_fallthru
      _
    %649 = vsyncpa [#allocation3], 1

</llo_original>
